<compile_context>
chip_gen: v6e
topology: v6e:2x2x1
jax: 0.10.0
libtpu: 0.0.40
codegen_flags: <defaults>
</compile_context>

<pallas_src>
import functools

import jax
import jax.numpy as jnp
from jax.experimental import pallas as pl
from jax.experimental.pallas import tpu as pltpu


# ----------------------------- kernels -----------------------------

def _sae_kernel_resident(x_ref, w_enc_ref, b_enc_ref, w_dec_ref, feat_ref, recon_ref):
    """Weights-resident path: grid=(B_tiles,); full w_enc/w_dec live in VMEM."""
    x = x_ref[...]  # native dtype (bf16 stays bf16 for MXU throughput)
    h = jnp.dot(x, w_enc_ref[...], preferred_element_type=jnp.float32)
    feat = jnp.maximum(h + b_enc_ref[...], 0.0)          # bias add + ReLU on VPU
    feat_c = feat.astype(feat_ref.dtype)                  # single cast, reused below
    feat_ref[...] = feat_c
    recon_ref[...] = jnp.dot(feat_c, w_dec_ref[...],
                             preferred_element_type=jnp.float32).astype(recon_ref.dtype)


def _sae_kernel_tiled_f32out(x_ref, w_enc_ref, b_enc_ref, w_dec_ref, feat_ref, recon_ref):
    """H-tiled path, float32 outputs: accumulate directly into the resident recon block."""
    j = pl.program_id(1)

    @pl.when(j == 0)
    def _():
        recon_ref[...] = jnp.zeros_like(recon_ref)

    x = x_ref[...]
    h = jnp.dot(x, w_enc_ref[...], preferred_element_type=jnp.float32)
    feat = jnp.maximum(h + b_enc_ref[...], 0.0)
    feat_c = feat.astype(feat_ref.dtype)
    feat_ref[...] = feat_c
    recon_ref[...] += jnp.dot(feat_c, w_dec_ref[...], preferred_element_type=jnp.float32)


def _sae_kernel_tiled_scratch(x_ref, w_enc_ref, b_enc_ref, w_dec_ref,
                              feat_ref, recon_ref, acc_ref):
    """H-tiled path, non-f32 outputs: f32 VMEM accumulator, cast+store on last H step."""
    j = pl.program_id(1)

    @pl.when(j == 0)
    def _():
        acc_ref[...] = jnp.zeros_like(acc_ref)

    x = x_ref[...]
    h = jnp.dot(x, w_enc_ref[...], preferred_element_type=jnp.float32)
    feat = jnp.maximum(h + b_enc_ref[...], 0.0)
    feat_c = feat.astype(feat_ref.dtype)
    feat_ref[...] = feat_c
    acc_ref[...] += jnp.dot(feat_c, w_dec_ref[...], preferred_element_type=jnp.float32)

    @pl.when(j == pl.num_programs(1) - 1)
    def _():
        recon_ref[...] = acc_ref[...].astype(recon_ref.dtype)


# ----------------------------- planning -----------------------------

def _round_up(n, m):
    return ((n + m - 1) // m) * m


def _vmem_budget_bytes():
    """Generation-aware VMEM limit with ~20% headroom for Mosaic scratch/spill."""
    cap = 64 * 1024 * 1024  # conservative fallback: v7x per-TensorCore VMEM
    try:
        cap = int(pltpu.get_tpu_info().vmem_capacity_bytes)
    except Exception:
        pass
    return int(cap * 0.8)   # ~51 MiB on v7x, ~102 MiB on v5e/v6e


_MIN_TB = {4: 8, 2: 16, 1: 32}  # minimum batch tile by itemsize (sublane packing)


def _plan_tiles(B, D_in, H, itemsize, budget, batch_tile, hidden_tile):
    """Pick ('resident'|'tiled', batch_tile, hidden_tile) under the VMEM budget.

    Priorities: (1) weights-resident path (no re-streaming) if it fits;
    (2) otherwise keep the batch tile as large as possible (arithmetic intensity),
    shrinking the hidden tile before the batch tile.
    """
    min_tb = _MIN_TB.get(itemsize, 8)

    if batch_tile is not None:
        tb_cands = [max(_round_up(batch_tile, min_tb), min_tb)]
    else:
        full = max(_round_up(B, min_tb), min_tb)
        tb_cands = [full] + [c for c in (2048, 1024, 768, 512, 384, 256, 192,
                                         128, 96, 64, 48, 32, 16, 8)
                             if min_tb <= c < full]

    if hidden_tile is not None:
        assert H % hidden_tile == 0, "hidden_tile must divide hidden_dim"
        th_cands = [hidden_tile]
    else:
        th_cands = [c for c in (8192, 4096, 2048, 1536, 1024, 768, 512, 384, 256, 128)
                    if H % c == 0] or [H]

    # ---- Path 1: weights resident in VMEM (no H grid axis, no re-streaming) ----
    if hidden_tile is None:
        # Count weight blocks at 2x (pipeline buffer allocation) to stay conservative.
        w_bytes = 2 * (D_in * H + H + H * D_in) * itemsize
        for tb in tb_cands:
            blk = 2 * (tb * D_in + tb * H + tb * D_in) * itemsize
            if w_bytes + blk <= budget:
                return "resident", tb, H

    # ---- Path 2: H-tiled accumulation (prefer large tb, shrink th first) ----
    for tb in tb_cands:
        for th in th_cands:
            scratch = 0 if itemsize == 4 else tb * D_in * 4
            foot = 2 * (tb * D_in + D_in * th + th + th * D_in
                        + tb * th + tb * D_in) * itemsize + scratch
            if foot <= budget:
                return "tiled", tb, th

    # Nothing fits cleanly: fall back to the smallest combination.
    return "tiled", tb_cands[-1], th_cands[-1]


# ----------------------------- wrapper -----------------------------

@functools.partial(jax.jit, static_argnames=("batch_tile", "hidden_tile"))
def sparse_autoencoder_forward(x, w_enc, b_enc, w_dec, *, batch_tile=None, hidden_tile=None):
    """x: [B, D_in]; w_enc: [D_in, H]; b_enc: [H]; w_dec: [H, D_in] (pre-transposed).

    Returns (features [B, H], reconstruction [B, D_in]) matching the PyTorch module:
      features       = ReLU(x @ w_enc + b_enc)
      reconstruction = features @ w_dec
    """
    B, D_in = x.shape
    H = w_enc.shape[1]
    out_dtype = x.dtype
    itemsize = x.dtype.itemsize

    budget = _vmem_budget_bytes()
    # Tiles are budgeted against ~90% of the compiler limit (double buffering is
    # counted explicitly in _plan_tiles).
    mode, tb, th = _plan_tiles(B, D_in, H, itemsize, int(budget * 0.9),
                               batch_tile, hidden_tile)

    # Pad the batch to an exact multiple of the batch tile: keeps stores unmasked /
    # lane-dense and satisfies the (8,128)/dtype-packing block constraint for any B.
    n_btiles = -(-B // tb)
    B_pad = n_btiles * tb
    if B_pad != B:
        x = jnp.pad(x, ((0, B_pad - B), (0, 0)))

    b_enc2d = b_enc.reshape(1, H)

    # Accurate HBM traffic estimate: weights are re-streamed once per batch tile on
    # the tiled path, fetched once on the resident path.
    weight_bytes = (w_enc.size + b_enc.size + w_dec.size) * itemsize
    weight_streams = 1 if mode == "resident" else n_btiles
    cost = pl.CostEstimate(
        flops=4 * B_pad * D_in * H,  # two matmuls, 2*B*D_in*H each
        transcendentals=0,
        bytes_accessed=(B_pad * D_in * itemsize
                        + weight_streams * weight_bytes
                        + (B_pad * H + B_pad * D_in) * itemsize),
    )
    compiler_params = pltpu.CompilerParams(
        # Batch axis parallel (shards across v7x's 2 TCs); H (if present) is the
        # reduction axis and must stay "arbitrary".
        dimension_semantics=("parallel",) if mode == "resident" else ("parallel", "arbitrary"),
        vmem_limit_bytes=budget,
    )
    out_shape = (
        jax.ShapeDtypeStruct((B_pad, H), out_dtype),      # features
        jax.ShapeDtypeStruct((B_pad, D_in), out_dtype),   # reconstruction
    )

    if mode == "resident":
        kernel = pl.pallas_call(
            _sae_kernel_resident,
            out_shape=out_shape,
            grid_spec=pltpu.PrefetchScalarGridSpec(
                num_scalar_prefetch=0,
                grid=(n_btiles,),
                in_specs=[
                    pl.BlockSpec((tb, D_in), lambda i: (i, 0)),   # x batch tile
                    pl.BlockSpec((D_in, H), lambda i: (0, 0)),    # w_enc: fetched once, resident
                    pl.BlockSpec((1, H), lambda i: (0, 0)),       # b_enc: resident
                    pl.BlockSpec((H, D_in), lambda i: (0, 0)),    # w_dec: fetched once, resident
                ],
                out_specs=[
                    pl.BlockSpec((tb, H), lambda i: (i, 0)),
                    pl.BlockSpec((tb, D_in), lambda i: (i, 0)),
                ],
            ),
            compiler_params=compiler_params,
            cost_estimate=cost,
        )
    else:
        f32_out = out_dtype == jnp.float32
        kernel_fn = _sae_kernel_tiled_f32out if f32_out else _sae_kernel_tiled_scratch
        scratch = [] if f32_out else [pltpu.VMEM((tb, D_in), jnp.float32)]
        kernel = pl.pallas_call(
            kernel_fn,
            out_shape=out_shape,
            grid_spec=pltpu.PrefetchScalarGridSpec(
                num_scalar_prefetch=0,
                grid=(n_btiles, H // th),
                in_specs=[
                    pl.BlockSpec((tb, D_in), lambda i, j: (i, 0)),   # x tile (constant over H)
                    pl.BlockSpec((D_in, th), lambda i, j: (0, j)),   # encoder weight tile
                    pl.BlockSpec((1, th), lambda i, j: (0, j)),      # encoder bias tile
                    pl.BlockSpec((th, D_in), lambda i, j: (j, 0)),   # decoder weight tile
                ],
                out_specs=[
                    pl.BlockSpec((tb, th), lambda i, j: (i, j)),     # features tile
                    pl.BlockSpec((tb, D_in), lambda i, j: (i, 0)),   # reconstruction (accumulated)
                ],
                scratch_shapes=scratch,
            ),
            compiler_params=compiler_params,
            cost_estimate=cost,
        )

    features, reconstruction = kernel(x, w_enc, b_enc2d, w_dec)
    if B_pad != B:
        features = features[:B]
        reconstruction = reconstruction[:B]
    return features, reconstruction


def _init_params(key, input_dim, hidden_dim, dtype=jnp.float32):
    """Deterministic init mimicking torch.nn.Linear default (U[-1/sqrt(fan_in), +1/sqrt(fan_in)])."""
    k1, k2, k3 = jax.random.split(key, 3)
    enc_bound = 1.0 / float(input_dim) ** 0.5
    dec_bound = 1.0 / float(hidden_dim) ** 0.5
    # Stored pre-transposed for the kernel (x @ w_enc == x @ W_enc^T in torch terms).
    w_enc = jax.random.uniform(k1, (input_dim, hidden_dim), dtype, -enc_bound, enc_bound)
    b_enc = jax.random.uniform(k2, (hidden_dim,), dtype, -enc_bound, enc_bound)
    w_dec = jax.random.uniform(k3, (hidden_dim, input_dim), dtype, -dec_bound, dec_bound)
    return w_enc, b_enc, w_dec


if __name__ == "__main__":
    key = jax.random.PRNGKey(0)
    kx, kp = jax.random.split(key)

    # Small but lane/MXU-friendly shapes.
    batch, input_dim, hidden_dim = 64, 128, 512
    x = jax.random.normal(kx, (batch, input_dim), jnp.float32)
    w_enc, b_enc, w_dec = _init_params(kp, input_dim, hidden_dim)

    # Pure-JAX reference.
    feat_ref = jnp.maximum(x @ w_enc + b_enc[None, :], 0.0)
    recon_ref = feat_ref @ w_dec

    # 1) Default plan: at these sizes the weights-resident fast path is selected.
    features, reconstruction = sparse_autoencoder_forward(x, w_enc, b_enc, w_dec)
    jax.block_until_ready((features, reconstruction))
    assert features.shape == (batch, hidden_dim)
    assert reconstruction.shape == (batch, input_dim)
    assert jnp.allclose(features, feat_ref, atol=1e-4, rtol=1e-4)
    assert jnp.allclose(reconstruction, recon_ref, atol=1e-4, rtol=1e-4)

    # 2) Forced H-tiled path (f32 output -> direct accumulation into the recon block).
    f2, r2 = sparse_autoencoder_forward(x, w_enc, b_enc, w_dec,
                                        batch_tile=32, hidden_tile=256)
    jax.block_until_ready((f2, r2))
    assert jnp.allclose(f2, feat_ref, atol=1e-4, rtol=1e-4)
    assert jnp.allclose(r2, recon_ref, atol=1e-4, rtol=1e-4)

    # 3) bf16 inputs exercise the f32-scratch accumulation + cast path.
    xb, web, beb, wdb = (a.astype(jnp.bfloat16) for a in (x, w_enc, b_enc, w_dec))
    f3, r3 = sparse_autoencoder_forward(xb, web, beb, wdb,
                                        batch_tile=32, hidden_tile=256)
    jax.block_until_ready((f3, r3))
    ref_f3 = jnp.maximum(xb.astype(jnp.float32) @ web.astype(jnp.float32)
                         + beb.astype(jnp.float32)[None, :], 0.0)
    ref_r3 = ref_f3.astype(jnp.bfloat16).astype(jnp.float32) @ wdb.astype(jnp.float32)
    assert jnp.allclose(f3.astype(jnp.float32), ref_f3, atol=2e-2, rtol=2e-2)
    assert jnp.allclose(r3.astype(jnp.float32), ref_r3, atol=3e-2, rtol=3e-2)

    print("KERNEL_OK")
</pallas_src>

<mosaic_0001>
module attributes {stable_mosaic.version = 11 : i64} {
  func.func @_sae_kernel_resident(%arg0: i32, %arg1: memref<64x128xf32, #tpu.memory_space<vmem>>, %arg2: memref<128x512xf32, #tpu.memory_space<vmem>>, %arg3: memref<1x512xf32, #tpu.memory_space<vmem>>, %arg4: memref<512x128xf32, #tpu.memory_space<vmem>>, %arg5: memref<64x512xf32, #tpu.memory_space<vmem>>, %arg6: memref<64x128xf32, #tpu.memory_space<vmem>>) attributes {dimension_semantics = [#tpu.dimension_semantics<parallel>], iteration_bounds = array<i64: 1>, scalar_prefetch = 0 : i64, scratch_operands = 0 : i64, tpu.core_type = #tpu.core_type<tc>, window_params = [{transform_indices = @transform_0, window_bounds = array<i64: 64, 128>}, {pipeline_mode = #tpu.pipeline_mode<synchronous>, transform_indices = @transform_1, window_bounds = array<i64: 128, 512>}, {pipeline_mode = #tpu.pipeline_mode<synchronous>, transform_indices = @transform_2, window_bounds = array<i64: 1, 512>}, {pipeline_mode = #tpu.pipeline_mode<synchronous>, transform_indices = @transform_3, window_bounds = array<i64: 512, 128>}, {transform_indices = @transform_4, window_bounds = array<i64: 64, 512>}, {transform_indices = @transform_5, window_bounds = array<i64: 64, 128>}]} {
    %c0 = arith.constant 0 : index
    %c0_0 = arith.constant 0 : index
    %0 = vector.load %arg1[%c0, %c0_0] : memref<64x128xf32, #tpu.memory_space<vmem>>, vector<64x128xf32>
    %c0_1 = arith.constant 0 : index
    %c0_2 = arith.constant 0 : index
    %1 = vector.load %arg2[%c0_1, %c0_2] : memref<128x512xf32, #tpu.memory_space<vmem>>, vector<128x512xf32>
    %cst = arith.constant dense<0.000000e+00> : vector<64x512xf32>
    %2 = tpu.matmul %0, %1, %cst {dimension_numbers = #tpu.dot_dimension_numbers<[1], [0], [0], [1], [0, 0, 1, 1], [], []>} : vector<64x128xf32>, vector<128x512xf32>, vector<64x512xf32> -> vector<64x512xf32>
    %c0_3 = arith.constant 0 : index
    %c0_4 = arith.constant 0 : index
    %3 = vector.load %arg3[%c0_3, %c0_4] : memref<1x512xf32, #tpu.memory_space<vmem>>, vector<1x512xf32>
    %4 = vector.broadcast %3 : vector<1x512xf32> to vector<64x512xf32>
    %5 = arith.addf %2, %4 : vector<64x512xf32>
    %cst_5 = arith.constant 0.000000e+00 : f32
    %6 = vector.broadcast %cst_5 : f32 to vector<64x512xf32>
    %7 = arith.maximumf %5, %6 : vector<64x512xf32>
    %c0_6 = arith.constant 0 : index
    %c0_7 = arith.constant 0 : index
    %8 = vector.load %arg5[%c0_6, %c0_7] : memref<64x512xf32, #tpu.memory_space<vmem>>, vector<64x512xf32>
    tpu.vector_store %arg5[%c0_6, %c0_7], %7 {strides = array<i32>} : memref<64x512xf32, #tpu.memory_space<vmem>>, vector<64x512xf32>,
    %c0_8 = arith.constant 0 : index
    %c0_9 = arith.constant 0 : index
    %9 = vector.load %arg4[%c0_8, %c0_9] : memref<512x128xf32, #tpu.memory_space<vmem>>, vector<512x128xf32>
    %cst_10 = arith.constant dense<0.000000e+00> : vector<64x128xf32>
    %10 = tpu.matmul %7, %9, %cst_10 {dimension_numbers = #tpu.dot_dimension_numbers<[1], [0], [0], [1], [0, 0, 1, 1], [], []>} : vector<64x512xf32>, vector<512x128xf32>, vector<64x128xf32> -> vector<64x128xf32>
    %c0_11 = arith.constant 0 : index
    %c0_12 = arith.constant 0 : index
    %11 = vector.load %arg6[%c0_11, %c0_12] : memref<64x128xf32, #tpu.memory_space<vmem>>, vector<64x128xf32>
    tpu.vector_store %arg6[%c0_11, %c0_12], %10 {strides = array<i32>} : memref<64x128xf32, #tpu.memory_space<vmem>>, vector<64x128xf32>,
    return
  }
  func.func @transform_0(%arg0: i32) -> (i32, i32) {
    %c0_i32 = arith.constant 0 : i32
    %c0_i32_0 = arith.constant 0 : i32
    return %arg0, %c0_i32 : i32, i32
  }
  func.func @transform_1(%arg0: i32) -> (i32, i32) {
    %c0_i32 = arith.constant 0 : i32
    %c0_i32_0 = arith.constant 0 : i32
    %c0_i32_1 = arith.constant 0 : i32
    return %c0_i32, %c0_i32_0 : i32, i32
  }
  func.func @transform_2(%arg0: i32) -> (i32, i32) {
    %c0_i32 = arith.constant 0 : i32
    %c0_i32_0 = arith.constant 0 : i32
    %c0_i32_1 = arith.constant 0 : i32
    return %c0_i32, %c0_i32_0 : i32, i32
  }
  func.func @transform_3(%arg0: i32) -> (i32, i32) {
    %c0_i32 = arith.constant 0 : i32
    %c0_i32_0 = arith.constant 0 : i32
    %c0_i32_1 = arith.constant 0 : i32
    return %c0_i32, %c0_i32_0 : i32, i32
  }
  func.func @transform_4(%arg0: i32) -> (i32, i32) {
    %c0_i32 = arith.constant 0 : i32
    %c0_i32_0 = arith.constant 0 : i32
    return %arg0, %c0_i32 : i32, i32
  }
  func.func @transform_5(%arg0: i32) -> (i32, i32) {
    %c0_i32 = arith.constant 0 : i32
    %c0_i32_0 = arith.constant 0 : i32
    return %arg0, %c0_i32 : i32, i32
  }
}

</mosaic_0001>

<llo_original>
// kernel: sparse_autoencoder_forward.1
$region0: #{sparse_autoencoder_forward.1}
  #allocation0 [shape = 'u32[]', space=smem, size = 0x4, offset = 0x4, fixed_abs, tag = 'smem constant byte address 0x4 - core index']
  #allocation1 [shape = 'u32[144,128]{1,0:T(1,128)}', space=vmem, size = 0x12000, scoped, tag = 'internal scratch']
  %s0 = inlined_call_operand.hbm [shape: f32[64,128], index: 0, kind: input, shape index: {}]
  %s1 = inlined_call_operand.hbm [shape: f32[128,512], index: 1, kind: input, shape index: {}]
  %s2 = inlined_call_operand.vmem [shape: f32[1,512], index: 2, kind: input, shape index: {}]
  %s3 = inlined_call_operand.hbm [shape: f32[512,128], index: 3, kind: input, shape index: {}]
  %s4 = inlined_call_operand.hbm [shape: f32[64,512], index: 4, kind: output, shape index: {0}]
  %s5 = inlined_call_operand.hbm [shape: f32[64,128], index: 5, kind: output, shape index: {1}]
  %6 = xla_tuple %s4, %s5
  %s7 = sld [smem:[#allocation0]]
  $region46: #{sparse_autoencoder_forward.1} parent=0
    _
  %s9 = ssub.s32 1, %s7
  %s10 = scalar_select 0, %s9, %s7
  $region1: #{sparse_autoencoder_forward.1} parent=0
    #allocation2 [shape = 'u8[32768]{0}', space=vmem, size = 0x8000, scoped, tag = 'input window, operand 0, single buffered']
    #allocation3 [shape = 's32[1]{0}', space=sflag, size = 0x4, scoped, tag = 'scoped memory for sparse_autoencoder_forward.1']
    #allocation4 [shape = 's32[1]{0}', space=sflag, size = 0x4, scoped, tag = 'scoped memory for sparse_autoencoder_forward.1']
    #allocation5 [shape = 'u8[262144]{0}', space=vmem, size = 0x40000, scoped, tag = 'input window, operand 1, single buffered']
    #allocation6 [shape = 's32[1]{0}', space=sflag, size = 0x4, scoped, tag = 'scoped memory for sparse_autoencoder_forward.1']
    #allocation7 [shape = 'u8[262144]{0}', space=vmem, size = 0x40000, scoped, tag = 'input window, operand 3, single buffered']
    #allocation8 [shape = 'u8[131072]{0}', space=vmem, size = 0x20000, scoped, tag = 'output window, operand 0, single buffered']
    #allocation9 [shape = 'u8[32768]{0}', space=vmem, size = 0x8000, scoped, tag = 'output window, operand 1, single buffered']
    #allocation10 [shape = 's32[1]{0}', space=sflag, size = 0x4, scoped, tag = 'scoped memory for sparse_autoencoder_forward.1']
    %11 = vsyncpa [#allocation3], 0
    %12 = vsyncpa [#allocation6], 0
    %13 = vsyncpa [#allocation4], 0
    %14 = vsyncpa [#allocation10], 0
    // Predicated region
    $region2: #{sparse_autoencoder_forward.1} parent=1 // pred_check
      _
    $region3: #{sparse_autoencoder_forward.1} parent=1 // pred_check_branch
      %16 = sbr.rel (0) target = $region5
    $region4: #{sparse_autoencoder_forward.1} parent=1 // pred_region
      %s18 = ssub.s32 1024, 1024
      %19 = vsyncadd [#allocation3], %s18
      %s20 = sshll.u32 [#allocation2], 4
      %s21 = int_to_ptr.vmem [resolvable:$true] %s20
      %26 = dma.hbm_to_vmem [thread:$0]  %s0, 1024, %s21, [#allocation3], 128, 128, 8
    $region5: #{sparse_autoencoder_forward.1} parent=1 // pred_fallthru
      _
    // Predicated region
    $region6: #{sparse_autoencoder_forward.1} parent=1 // pred_check
      _
    $region7: #{sparse_autoencoder_forward.1} parent=1 // pred_check_branch
      %28 = sbr.rel (0) target = $region9
    $region8: #{sparse_autoencoder_forward.1} parent=1 // pred_region
      %s30 = ssub.s32 8192, 8192
      %31 = vsyncadd [#allocation6], %s30
      %s32 = sshll.u32 [#allocation5], 4
      %s33 = int_to_ptr.vmem [resolvable:$true] %s32
      %38 = dma.hbm_to_vmem [thread:$0]  %s1, 8192, %s33, [#allocation6], 512, 512, 32
    $region9: #{sparse_autoencoder_forward.1} parent=1 // pred_fallthru
      _
    // Predicated region
    $region10: #{sparse_autoencoder_forward.1} parent=1 // pred_check
      _
    $region11: #{sparse_autoencoder_forward.1} parent=1 // pred_check_branch
      %40 = sbr.rel (0) target = $region13
    $region12: #{sparse_autoencoder_forward.1} parent=1 // pred_region
      _
    $region13: #{sparse_autoencoder_forward.1} parent=1 // pred_fallthru
      _
    // Predicated region
    $region14: #{sparse_autoencoder_forward.1} parent=1 // pred_check
      _
    $region15: #{sparse_autoencoder_forward.1} parent=1 // pred_check_branch
      %42 = sbr.rel (0) target = $region17
    $region16: #{sparse_autoencoder_forward.1} parent=1 // pred_region
      %s44 = ssub.s32 8192, 8192
      %45 = vsyncadd [#allocation6], %s44
      %s46 = sshll.u32 [#allocation7], 4
      %s47 = int_to_ptr.vmem [resolvable:$true] %s46
      %52 = dma.hbm_to_vmem [thread:$0]  %s3, 8192, %s47, [#allocation6], 128, 128, 8
    $region17: #{sparse_autoencoder_forward.1} parent=1 // pred_fallthru
      _
    // Predicated region
    $region18: #{sparse_autoencoder_forward.1} parent=1 // pred_check
      _
    $region19: #{sparse_autoencoder_forward.1} parent=1 // pred_check_branch
      %54 = sbr.rel (0) target = $region21
    $region20: #{sparse_autoencoder_forward.1} parent=1 // pred_region
      %55 = dma.done [#allocation3], 1024
    $region21: #{sparse_autoencoder_forward.1} parent=1 // pred_fallthru
      _
    // Predicated region
    $region22: #{sparse_autoencoder_forward.1} parent=1 // pred_check
      _
    $region23: #{sparse_autoencoder_forward.1} parent=1 // pred_check_branch
      %57 = sbr.rel (0) target = $region25
    $region24: #{sparse_autoencoder_forward.1} parent=1 // pred_region
      %58 = dma.done [#allocation6], 8192
    $region25: #{sparse_autoencoder_forward.1} parent=1 // pred_fallthru
      _
    // Predicated region
    $region26: #{sparse_autoencoder_forward.1} parent=1 // pred_check
      _
    $region27: #{sparse_autoencoder_forward.1} parent=1 // pred_check_branch
      %60 = sbr.rel (0) target = $region29
    $region28: #{sparse_autoencoder_forward.1} parent=1 // pred_region
      %61 = dma.done [#allocation6], 8192
    $region29: #{sparse_autoencoder_forward.1} parent=1 // pred_fallthru
      _
    %v62 = vld [vmem:[#allocation2] sm:$0xff]
    %v63 = vld [vmem:[#allocation2 + $0x8] sm:$0xff]
    %v64 = vld [vmem:[#allocation2 + $0x10] sm:$0xff]
    %v65 = vld [vmem:[#allocation2 + $0x18] sm:$0xff]
    %v66 = vld [vmem:[#allocation2 + $0x20] sm:$0xff]
    %v67 = vld [vmem:[#allocation2 + $0x28] sm:$0xff]
    %v68 = vld [vmem:[#allocation2 + $0x30] sm:$0xff]
    %v69 = vld [vmem:[#allocation2 + $0x38] sm:$0xff]
    %v70 = vld [vmem:[#allocation5] sm:$0xff]
    %v71 = vld [vmem:[#allocation5 + $0x8] sm:$0xff]
    %v72 = vld [vmem:[#allocation5 + $0x10] sm:$0xff]
    %v73 = vld [vmem:[#allocation5 + $0x18] sm:$0xff]
    %v74 = vld [vmem:[#allocation5 + $0x20] sm:$0xff]
    %v75 = vld [vmem:[#allocation5 + $0x28] sm:$0xff]
    %v76 = vld [vmem:[#allocation5 + $0x30] sm:$0xff]
    %v77 = vld [vmem:[#allocation5 + $0x38] sm:$0xff]
    %v78 = vld [vmem:[#allocation5 + $0x40] sm:$0xff]
    %v79 = vld [vmem:[#allocation5 + $0x48] sm:$0xff]
    %v80 = vld [vmem:[#allocation5 + $0x50] sm:$0xff]
    %v81 = vld [vmem:[#allocation5 + $0x58] sm:$0xff]
    %v82 = vld [vmem:[#allocation5 + $0x60] sm:$0xff]
    %v83 = vld [vmem:[#allocation5 + $0x68] sm:$0xff]
    %v84 = vld [vmem:[#allocation5 + $0x70] sm:$0xff]
    %v85 = vld [vmem:[#allocation5 + $0x78] sm:$0xff]
    %v86 = vld [vmem:[#allocation5 + $0x80] sm:$0xff]
    %v87 = vld [vmem:[#allocation5 + $0x88] sm:$0xff]
    %v88 = vld [vmem:[#allocation5 + $0x90] sm:$0xff]
    %v89 = vld [vmem:[#allocation5 + $0x98] sm:$0xff]
    %v90 = vld [vmem:[#allocation5 + $0xa0] sm:$0xff]
    %v91 = vld [vmem:[#allocation5 + $0xa8] sm:$0xff]
    %v92 = vld [vmem:[#allocation5 + $0xb0] sm:$0xff]
    %v93 = vld [vmem:[#allocation5 + $0xb8] sm:$0xff]
    %v94 = vld [vmem:[#allocation5 + $0xc0] sm:$0xff]
    %v95 = vld [vmem:[#allocation5 + $0xc8] sm:$0xff]
    %v96 = vld [vmem:[#allocation5 + $0xd0] sm:$0xff]
    %v97 = vld [vmem:[#allocation5 + $0xd8] sm:$0xff]
    %v98 = vld [vmem:[#allocation5 + $0xe0] sm:$0xff]
    %v99 = vld [vmem:[#allocation5 + $0xe8] sm:$0xff]
    %v100 = vld [vmem:[#allocation5 + $0xf0] sm:$0xff]
    %v101 = vld [vmem:[#allocation5 + $0xf8] sm:$0xff]
    %v102 = vld [vmem:[#allocation5 + $0x100] sm:$0xff]
    %v103 = vld [vmem:[#allocation5 + $0x108] sm:$0xff]
    %v104 = vld [vmem:[#allocation5 + $0x110] sm:$0xff]
    %v105 = vld [vmem:[#allocation5 + $0x118] sm:$0xff]
    %v106 = vld [vmem:[#allocation5 + $0x120] sm:$0xff]
    %v107 = vld [vmem:[#allocation5 + $0x128] sm:$0xff]
    %v108 = vld [vmem:[#allocation5 + $0x130] sm:$0xff]
    %v109 = vld [vmem:[#allocation5 + $0x138] sm:$0xff]
    %v110 = vld [vmem:[#allocation5 + $0x140] sm:$0xff]
    %v111 = vld [vmem:[#allocation5 + $0x148] sm:$0xff]
    %v112 = vld [vmem:[#allocation5 + $0x150] sm:$0xff]
    %v113 = vld [vmem:[#allocation5 + $0x158] sm:$0xff]
    %v114 = vld [vmem:[#allocation5 + $0x160] sm:$0xff]
    %v115 = vld [vmem:[#allocation5 + $0x168] sm:$0xff]
    %v116 = vld [vmem:[#allocation5 + $0x170] sm:$0xff]
    %v117 = vld [vmem:[#allocation5 + $0x178] sm:$0xff]
    %v118 = vld [vmem:[#allocation5 + $0x180] sm:$0xff]
    %v119 = vld [vmem:[#allocation5 + $0x188] sm:$0xff]
    %v120 = vld [vmem:[#allocation5 + $0x190] sm:$0xff]
    %v121 = vld [vmem:[#allocation5 + $0x198] sm:$0xff]
    %v122 = vld [vmem:[#allocation5 + $0x1a0] sm:$0xff]
    %v123 = vld [vmem:[#allocation5 + $0x1a8] sm:$0xff]
    %v124 = vld [vmem:[#allocation5 + $0x1b0] sm:$0xff]
    %v125 = vld [vmem:[#allocation5 + $0x1b8] sm:$0xff]
    %v126 = vld [vmem:[#allocation5 + $0x1c0] sm:$0xff]
    %v127 = vld [vmem:[#allocation5 + $0x1c8] sm:$0xff]
    %v128 = vld [vmem:[#allocation5 + $0x1d0] sm:$0xff]
    %v129 = vld [vmem:[#allocation5 + $0x1d8] sm:$0xff]
    %v130 = vld [vmem:[#allocation5 + $0x1e0] sm:$0xff]
    %v131 = vld [vmem:[#allocation5 + $0x1e8] sm:$0xff]
    %v132 = vld [vmem:[#allocation5 + $0x1f0] sm:$0xff]
    %v133 = vld [vmem:[#allocation5 + $0x1f8] sm:$0xff]
    %v134 = vld [vmem:[%s2] sm:$0xf]
    %v136 = vlaneseq
    %v137 = vshrl.u32 %v136, 7
    %v138 = vsub.s32 0, %v137
    %v139 = vrot.slane %v134, %v138
    %v140 = vlaneseq
    %v141 = vshrl.u32 %v140, 7
    %v142 = vsub.s32 1, %v141
    %v143 = vrot.slane %v134, %v142
    %v144 = vlaneseq
    %v145 = vshrl.u32 %v144, 7
    %v146 = vsub.s32 2, %v145
    %v147 = vrot.slane %v134, %v146
    %v148 = vlaneseq
    %v149 = vshrl.u32 %v148, 7
    %v150 = vsub.s32 3, %v149
    %v151 = vrot.slane %v134, %v150
    %156 = vmatprep.subr.mxu0 %v131
    %157 = vmatpush1.msra.mxu0 %v130
    %158 = vmatprep.subr.mxu0 %v127
    %159 = vmatpush1.msra.mxu0 %v126
    %160 = vmatprep.subr.mxu0 %v123
    %161 = vmatpush1.msra.mxu0 %v122
    %162 = vmatprep.subr.mxu0 %v119
    %163 = vmatpush1.msra.mxu0 %v118
    %164 = vmatprep.subr.mxu0 %v115
    %165 = vmatpush1.msra.mxu0 %v114
    %166 = vmatprep.subr.mxu0 %v111
    %167 = vmatpush1.msra.mxu0 %v110
    %168 = vmatprep.subr.mxu0 %v107
    %169 = vmatpush1.msra.mxu0 %v106
    %170 = vmatprep.subr.mxu0 %v103
    %171 = vmatpush1.msra.mxu0 %v102
    %172 = vmatprep.subr.mxu0 %v99
    %173 = vmatpush1.msra.mxu0 %v98
    %174 = vmatprep.subr.mxu0 %v95
    %175 = vmatpush1.msra.mxu0 %v94
    %176 = vmatprep.subr.mxu0 %v91
    %177 = vmatpush1.msra.mxu0 %v90
    %178 = vmatprep.subr.mxu0 %v87
    %179 = vmatpush1.msra.mxu0 %v86
    %180 = vmatprep.subr.mxu0 %v83
    %181 = vmatpush1.msra.mxu0 %v82
    %182 = vmatprep.subr.mxu0 %v79
    %183 = vmatpush1.msra.mxu0 %v78
    %184 = vmatprep.subr.mxu0 %v75
    %185 = vmatpush1.msra.mxu0 %v74
    %186 = vmatprep.subr.mxu0 %v71
    %187 = vmatpush1.msra.mxu0 %v70
    %188 = vmatprep.subr.mxu0 0.0
    %189 = vmatpush2.msra.mxu0 0.0
    %190 = vmatprep.subr.mxu0 0.0
    %191 = vmatpush2.msra.mxu0 0.0
    %192 = vmatprep.subr.mxu0 0.0
    %193 = vmatpush2.msra.mxu0 0.0
    %194 = vmatprep.subr.mxu0 0.0
    %195 = vmatpush2.msra.mxu0 0.0
    %196 = vmatprep.subr.mxu0 0.0
    %197 = vmatpush2.msra.mxu0 0.0
    %198 = vmatprep.subr.mxu0 0.0
    %199 = vmatpush2.msra.mxu0 0.0
    %200 = vmatprep.subr.mxu0 0.0
    %201 = vmatpush2.msra.mxu0 0.0
    %202 = vmatprep.subr.mxu0 0.0
    %203 = vmatpush2.msra.mxu0 0.0
    %204 = vmatprep.subr.mxu0 0.0
    %205 = vmatpush2.msra.mxu0 0.0
    %206 = vmatprep.subr.mxu0 0.0
    %207 = vmatpush2.msra.mxu0 0.0
    %208 = vmatprep.subr.mxu0 0.0
    %209 = vmatpush2.msra.mxu0 0.0
    %210 = vmatprep.subr.mxu0 0.0
    %211 = vmatpush2.msra.mxu0 0.0
    %212 = vmatprep.subr.mxu0 0.0
    %213 = vmatpush2.msra.mxu0 0.0
    %214 = vmatprep.subr.mxu0 0.0
    %215 = vmatpush2.msra.mxu0 0.0
    %216 = vmatprep.subr.mxu0 0.0
    %217 = vmatpush2.msra.mxu0 0.0
    %218 = vmatprep.subr.mxu0 0.0
    %219 = vmatpush2.msra.mxu0 0.0
    %220 = vmatprep.mubr.f32.mxu0 0.0
    %221 = vmatmul.mubr.f32.gmra.mxu0 %v62
    %v222 = vpop.f32.mrf.mxu0
    %v223 = vadd.f32 %v139, %v222
    %v224 = vpop.f32.mrf.mxu0
    %v225 = vadd.f32 %v143, %v224
    %226 = vmatprep.mubr.f32.mxu0 0.0
    %227 = vmatmul.mubr.f32.gmra.mxu0 %v63
    %v228 = vpop.f32.mrf.mxu0
    %v229 = vadd.f32 %v139, %v228
    %v230 = vpop.f32.mrf.mxu0
    %v231 = vadd.f32 %v143, %v230
    %232 = vmatprep.mubr.f32.mxu0 0.0
    %233 = vmatmul.mubr.f32.gmra.mxu0 %v64
    %v234 = vpop.f32.mrf.mxu0
    %v235 = vadd.f32 %v139, %v234
    %v236 = vpop.f32.mrf.mxu0
    %v237 = vadd.f32 %v143, %v236
    %238 = vmatprep.mubr.f32.mxu0 0.0
    %239 = vmatmul.mubr.f32.gmra.mxu0 %v65
    %v240 = vpop.f32.mrf.mxu0
    %v241 = vadd.f32 %v139, %v240
    %v242 = vpop.f32.mrf.mxu0
    %v243 = vadd.f32 %v143, %v242
    %244 = vmatprep.mubr.f32.mxu0 0.0
    %245 = vmatmul.mubr.f32.gmra.mxu0 %v66
    %v246 = vpop.f32.mrf.mxu0
    %v247 = vadd.f32 %v139, %v246
    %v248 = vpop.f32.mrf.mxu0
    %v249 = vadd.f32 %v143, %v248
    %250 = vmatprep.mubr.f32.mxu0 0.0
    %251 = vmatmul.mubr.f32.gmra.mxu0 %v67
    %v252 = vpop.f32.mrf.mxu0
    %v253 = vadd.f32 %v139, %v252
    %v254 = vpop.f32.mrf.mxu0
    %v255 = vadd.f32 %v143, %v254
    %256 = vmatprep.mubr.f32.mxu0 0.0
    %257 = vmatmul.mubr.f32.gmra.mxu0 %v68
    %v258 = vpop.f32.mrf.mxu0
    %v259 = vadd.f32 %v139, %v258
    %v260 = vpop.f32.mrf.mxu0
    %v261 = vadd.f32 %v143, %v260
    %262 = vmatprep.mubr.f32.mxu0 0.0
    %263 = vmatmul.mubr.f32.gmra.mxu0 %v69
    %v264 = vpop.f32.mrf.mxu0
    %v265 = vadd.f32 %v139, %v264
    %v266 = vpop.f32.mrf.mxu0
    %v267 = vadd.f32 %v143, %v266
    %268 = vdwg.mxu0
    %269 = vmatprep.subr.mxu0 %v133
    %270 = vmatpush1.msra.mxu0 %v132
    %271 = vmatprep.subr.mxu0 %v129
    %272 = vmatpush1.msra.mxu0 %v128
    %273 = vmatprep.subr.mxu0 %v125
    %274 = vmatpush1.msra.mxu0 %v124
    %275 = vmatprep.subr.mxu0 %v121
    %276 = vmatpush1.msra.mxu0 %v120
    %277 = vmatprep.subr.mxu0 %v117
    %278 = vmatpush1.msra.mxu0 %v116
    %279 = vmatprep.subr.mxu0 %v113
    %280 = vmatpush1.msra.mxu0 %v112
    %281 = vmatprep.subr.mxu0 %v109
    %282 = vmatpush1.msra.mxu0 %v108
    %283 = vmatprep.subr.mxu0 %v105
    %284 = vmatpush1.msra.mxu0 %v104
    %285 = vmatprep.subr.mxu0 %v101
    %286 = vmatpush1.msra.mxu0 %v100
    %287 = vmatprep.subr.mxu0 %v97
    %288 = vmatpush1.msra.mxu0 %v96
    %289 = vmatprep.subr.mxu0 %v93
    %290 = vmatpush1.msra.mxu0 %v92
    %291 = vmatprep.subr.mxu0 %v89
    %292 = vmatpush1.msra.mxu0 %v88
    %293 = vmatprep.subr.mxu0 %v85
    %294 = vmatpush1.msra.mxu0 %v84
    %295 = vmatprep.subr.mxu0 %v81
    %296 = vmatpush1.msra.mxu0 %v80
    %297 = vmatprep.subr.mxu0 %v77
    %298 = vmatpush1.msra.mxu0 %v76
    %299 = vmatprep.subr.mxu0 %v73
    %300 = vmatpush1.msra.mxu0 %v72
    %301 = vmatprep.subr.mxu0 0.0
    %302 = vmatpush2.msra.mxu0 0.0
    %303 = vmatprep.subr.mxu0 0.0
    %304 = vmatpush2.msra.mxu0 0.0
    %305 = vmatprep.subr.mxu0 0.0
    %306 = vmatpush2.msra.mxu0 0.0
    %307 = vmatprep.subr.mxu0 0.0
    %308 = vmatpush2.msra.mxu0 0.0
    %309 = vmatprep.subr.mxu0 0.0
    %310 = vmatpush2.msra.mxu0 0.0
    %311 = vmatprep.subr.mxu0 0.0
    %312 = vmatpush2.msra.mxu0 0.0
    %313 = vmatprep.subr.mxu0 0.0
    %314 = vmatpush2.msra.mxu0 0.0
    %315 = vmatprep.subr.mxu0 0.0
    %316 = vmatpush2.msra.mxu0 0.0
    %317 = vmatprep.subr.mxu0 0.0
    %318 = vmatpush2.msra.mxu0 0.0
    %319 = vmatprep.subr.mxu0 0.0
    %320 = vmatpush2.msra.mxu0 0.0
    %321 = vmatprep.subr.mxu0 0.0
    %322 = vmatpush2.msra.mxu0 0.0
    %323 = vmatprep.subr.mxu0 0.0
    %324 = vmatpush2.msra.mxu0 0.0
    %325 = vmatprep.subr.mxu0 0.0
    %326 = vmatpush2.msra.mxu0 0.0
    %327 = vmatprep.subr.mxu0 0.0
    %328 = vmatpush2.msra.mxu0 0.0
    %329 = vmatprep.subr.mxu0 0.0
    %330 = vmatpush2.msra.mxu0 0.0
    %331 = vmatprep.subr.mxu0 0.0
    %332 = vmatpush2.msra.mxu0 0.0
    %333 = vmatprep.mubr.f32.mxu0 0.0
    %334 = vmatmul.mubr.f32.gmra.mxu0 %v62
    %v335 = vpop.f32.mrf.mxu0
    %v336 = vadd.f32 %v147, %v335
    %v337 = vpop.f32.mrf.mxu0
    %v338 = vadd.f32 %v151, %v337
    %339 = vmatprep.mubr.f32.mxu0 0.0
    %340 = vmatmul.mubr.f32.gmra.mxu0 %v63
    %v341 = vpop.f32.mrf.mxu0
    %v342 = vadd.f32 %v147, %v341
    %v343 = vpop.f32.mrf.mxu0
    %v344 = vadd.f32 %v151, %v343
    %345 = vmatprep.mubr.f32.mxu0 0.0
    %346 = vmatmul.mubr.f32.gmra.mxu0 %v64
    %v347 = vpop.f32.mrf.mxu0
    %v348 = vadd.f32 %v147, %v347
    %v349 = vpop.f32.mrf.mxu0
    %v350 = vadd.f32 %v151, %v349
    %351 = vmatprep.mubr.f32.mxu0 0.0
    %352 = vmatmul.mubr.f32.gmra.mxu0 %v65
    %v353 = vpop.f32.mrf.mxu0
    %v354 = vadd.f32 %v147, %v353
    %v355 = vpop.f32.mrf.mxu0
    %v356 = vadd.f32 %v151, %v355
    %357 = vmatprep.mubr.f32.mxu0 0.0
    %358 = vmatmul.mubr.f32.gmra.mxu0 %v66
    %v359 = vpop.f32.mrf.mxu0
    %v360 = vadd.f32 %v147, %v359
    %v361 = vpop.f32.mrf.mxu0
    %v362 = vadd.f32 %v151, %v361
    %363 = vmatprep.mubr.f32.mxu0 0.0
    %364 = vmatmul.mubr.f32.gmra.mxu0 %v67
    %v365 = vpop.f32.mrf.mxu0
    %v366 = vadd.f32 %v147, %v365
    %v367 = vpop.f32.mrf.mxu0
    %v368 = vadd.f32 %v151, %v367
    %369 = vmatprep.mubr.f32.mxu0 0.0
    %370 = vmatmul.mubr.f32.gmra.mxu0 %v68
    %v371 = vpop.f32.mrf.mxu0
    %v372 = vadd.f32 %v147, %v371
    %v373 = vpop.f32.mrf.mxu0
    %v374 = vadd.f32 %v151, %v373
    %375 = vmatprep.mubr.f32.mxu0 0.0
    %376 = vmatmul.mubr.f32.gmra.mxu0 %v69
    %v377 = vpop.f32.mrf.mxu0
    %v378 = vadd.f32 %v147, %v377
    %v379 = vpop.f32.mrf.mxu0
    %v380 = vadd.f32 %v151, %v379
    %381 = vdwg.mxu0
    %v382 = vmax.f32 %v223, 0.0
    %v383 = vmax.f32 %v225, 0.0
    %v384 = vmax.f32 %v336, 0.0
    %v385 = vmax.f32 %v338, 0.0
    %v386 = vmax.f32 %v229, 0.0
    %v387 = vmax.f32 %v231, 0.0
    %v388 = vmax.f32 %v342, 0.0
    %v389 = vmax.f32 %v344, 0.0
    %v390 = vmax.f32 %v235, 0.0
    %v391 = vmax.f32 %v237, 0.0
    %v392 = vmax.f32 %v348, 0.0
    %v393 = vmax.f32 %v350, 0.0
    %v394 = vmax.f32 %v241, 0.0
    %v395 = vmax.f32 %v243, 0.0
    %v396 = vmax.f32 %v354, 0.0
    %v397 = vmax.f32 %v356, 0.0
    %v398 = vmax.f32 %v247, 0.0
    %v399 = vmax.f32 %v249, 0.0
    %v400 = vmax.f32 %v360, 0.0
    %v401 = vmax.f32 %v362, 0.0
    %v402 = vmax.f32 %v253, 0.0
    %v403 = vmax.f32 %v255, 0.0
    %v404 = vmax.f32 %v366, 0.0
    %v405 = vmax.f32 %v368, 0.0
    %v406 = vmax.f32 %v259, 0.0
    %v407 = vmax.f32 %v261, 0.0
    %v408 = vmax.f32 %v372, 0.0
    %v409 = vmax.f32 %v374, 0.0
    %v410 = vmax.f32 %v265, 0.0
    %v411 = vmax.f32 %v267, 0.0
    %v412 = vmax.f32 %v378, 0.0
    %v413 = vmax.f32 %v380, 0.0
    %414 = vst [vmem:[#allocation8] sm:$0xff] %v382
    %415 = vst [vmem:[#allocation8 + $0x8] sm:$0xff] %v383
    %416 = vst [vmem:[#allocation8 + $0x10] sm:$0xff] %v384
    %417 = vst [vmem:[#allocation8 + $0x18] sm:$0xff] %v385
    %418 = vst [vmem:[#allocation8 + $0x20] sm:$0xff] %v386
    %419 = vst [vmem:[#allocation8 + $0x28] sm:$0xff] %v387
    %420 = vst [vmem:[#allocation8 + $0x30] sm:$0xff] %v388
    %421 = vst [vmem:[#allocation8 + $0x38] sm:$0xff] %v389
    %422 = vst [vmem:[#allocation8 + $0x40] sm:$0xff] %v390
    %423 = vst [vmem:[#allocation8 + $0x48] sm:$0xff] %v391
    %424 = vst [vmem:[#allocation8 + $0x50] sm:$0xff] %v392
    %425 = vst [vmem:[#allocation8 + $0x58] sm:$0xff] %v393
    %426 = vst [vmem:[#allocation8 + $0x60] sm:$0xff] %v394
    %427 = vst [vmem:[#allocation8 + $0x68] sm:$0xff] %v395
    %428 = vst [vmem:[#allocation8 + $0x70] sm:$0xff] %v396
    %429 = vst [vmem:[#allocation8 + $0x78] sm:$0xff] %v397
    %430 = vst [vmem:[#allocation8 + $0x80] sm:$0xff] %v398
    %431 = vst [vmem:[#allocation8 + $0x88] sm:$0xff] %v399
    %432 = vst [vmem:[#allocation8 + $0x90] sm:$0xff] %v400
    %433 = vst [vmem:[#allocation8 + $0x98] sm:$0xff] %v401
    %434 = vst [vmem:[#allocation8 + $0xa0] sm:$0xff] %v402
    %435 = vst [vmem:[#allocation8 + $0xa8] sm:$0xff] %v403
    %436 = vst [vmem:[#allocation8 + $0xb0] sm:$0xff] %v404
    %437 = vst [vmem:[#allocation8 + $0xb8] sm:$0xff] %v405
    %438 = vst [vmem:[#allocation8 + $0xc0] sm:$0xff] %v406
    %439 = vst [vmem:[#allocation8 + $0xc8] sm:$0xff] %v407
    %440 = vst [vmem:[#allocation8 + $0xd0] sm:$0xff] %v408
    %441 = vst [vmem:[#allocation8 + $0xd8] sm:$0xff] %v409
    %442 = vst [vmem:[#allocation8 + $0xe0] sm:$0xff] %v410
    %443 = vst [vmem:[#allocation8 + $0xe8] sm:$0xff] %v411
    %444 = vst [vmem:[#allocation8 + $0xf0] sm:$0xff] %v412
    %445 = vst [vmem:[#allocation8 + $0xf8] sm:$0xff] %v413
    %v446 = vld [vmem:[#allocation7] sm:$0xff]
    %v447 = vld [vmem:[#allocation7 + $0x8] sm:$0xff]
    %v448 = vld [vmem:[#allocation7 + $0x10] sm:$0xff]
    %v449 = vld [vmem:[#allocation7 + $0x18] sm:$0xff]
    %v450 = vld [vmem:[#allocation7 + $0x20] sm:$0xff]
    %v451 = vld [vmem:[#allocation7 + $0x28] sm:$0xff]
    %v452 = vld [vmem:[#allocation7 + $0x30] sm:$0xff]
    %v453 = vld [vmem:[#allocation7 + $0x38] sm:$0xff]
    %v454 = vld [vmem:[#allocation7 + $0x40] sm:$0xff]
    %v455 = vld [vmem:[#allocation7 + $0x48] sm:$0xff]
    %v456 = vld [vmem:[#allocation7 + $0x50] sm:$0xff]
    %v457 = vld [vmem:[#allocation7 + $0x58] sm:$0xff]
    %v458 = vld [vmem:[#allocation7 + $0x60] sm:$0xff]
    %v459 = vld [vmem:[#allocation7 + $0x68] sm:$0xff]
    %v460 = vld [vmem:[#allocation7 + $0x70] sm:$0xff]
    %v461 = vld [vmem:[#allocation7 + $0x78] sm:$0xff]
    %v462 = vld [vmem:[#allocation7 + $0x80] sm:$0xff]
    %v463 = vld [vmem:[#allocation7 + $0x88] sm:$0xff]
    %v464 = vld [vmem:[#allocation7 + $0x90] sm:$0xff]
    %v465 = vld [vmem:[#allocation7 + $0x98] sm:$0xff]
    %v466 = vld [vmem:[#allocation7 + $0xa0] sm:$0xff]
    %v467 = vld [vmem:[#allocation7 + $0xa8] sm:$0xff]
    %v468 = vld [vmem:[#allocation7 + $0xb0] sm:$0xff]
    %v469 = vld [vmem:[#allocation7 + $0xb8] sm:$0xff]
    %v470 = vld [vmem:[#allocation7 + $0xc0] sm:$0xff]
    %v471 = vld [vmem:[#allocation7 + $0xc8] sm:$0xff]
    %v472 = vld [vmem:[#allocation7 + $0xd0] sm:$0xff]
    %v473 = vld [vmem:[#allocation7 + $0xd8] sm:$0xff]
    %v474 = vld [vmem:[#allocation7 + $0xe0] sm:$0xff]
    %v475 = vld [vmem:[#allocation7 + $0xe8] sm:$0xff]
    %v476 = vld [vmem:[#allocation7 + $0xf0] sm:$0xff]
    %v477 = vld [vmem:[#allocation7 + $0xf8] sm:$0xff]
    %v478 = vld [vmem:[#allocation7 + $0x100] sm:$0xff]
    %v479 = vld [vmem:[#allocation7 + $0x108] sm:$0xff]
    %v480 = vld [vmem:[#allocation7 + $0x110] sm:$0xff]
    %v481 = vld [vmem:[#allocation7 + $0x118] sm:$0xff]
    %v482 = vld [vmem:[#allocation7 + $0x120] sm:$0xff]
    %v483 = vld [vmem:[#allocation7 + $0x128] sm:$0xff]
    %v484 = vld [vmem:[#allocation7 + $0x130] sm:$0xff]
    %v485 = vld [vmem:[#allocation7 + $0x138] sm:$0xff]
    %v486 = vld [vmem:[#allocation7 + $0x140] sm:$0xff]
    %v487 = vld [vmem:[#allocation7 + $0x148] sm:$0xff]
    %v488 = vld [vmem:[#allocation7 + $0x150] sm:$0xff]
    %v489 = vld [vmem:[#allocation7 + $0x158] sm:$0xff]
    %v490 = vld [vmem:[#allocation7 + $0x160] sm:$0xff]
    %v491 = vld [vmem:[#allocation7 + $0x168] sm:$0xff]
    %v492 = vld [vmem:[#allocation7 + $0x170] sm:$0xff]
    %v493 = vld [vmem:[#allocation7 + $0x178] sm:$0xff]
    %v494 = vld [vmem:[#allocation7 + $0x180] sm:$0xff]
    %v495 = vld [vmem:[#allocation7 + $0x188] sm:$0xff]
    %v496 = vld [vmem:[#allocation7 + $0x190] sm:$0xff]
    %v497 = vld [vmem:[#allocation7 + $0x198] sm:$0xff]
    %v498 = vld [vmem:[#allocation7 + $0x1a0] sm:$0xff]
    %v499 = vld [vmem:[#allocation7 + $0x1a8] sm:$0xff]
    %v500 = vld [vmem:[#allocation7 + $0x1b0] sm:$0xff]
    %v501 = vld [vmem:[#allocation7 + $0x1b8] sm:$0xff]
    %v502 = vld [vmem:[#allocation7 + $0x1c0] sm:$0xff]
    %v503 = vld [vmem:[#allocation7 + $0x1c8] sm:$0xff]
    %v504 = vld [vmem:[#allocation7 + $0x1d0] sm:$0xff]
    %v505 = vld [vmem:[#allocation7 + $0x1d8] sm:$0xff]
    %v506 = vld [vmem:[#allocation7 + $0x1e0] sm:$0xff]
    %v507 = vld [vmem:[#allocation7 + $0x1e8] sm:$0xff]
    %v508 = vld [vmem:[#allocation7 + $0x1f0] sm:$0xff]
    %v509 = vld [vmem:[#allocation7 + $0x1f8] sm:$0xff]
    %510 = vmatprep.subr.mxu0 0.0
    %511 = vmatpush1.msra.mxu0 %v461
    %512 = vmatprep.subr.mxu0 0.0
    %513 = vmatpush1.msra.mxu0 %v460
    %514 = vmatprep.subr.mxu0 0.0
    %515 = vmatpush1.msra.mxu0 %v459
    %516 = vmatprep.subr.mxu0 0.0
    %517 = vmatpush1.msra.mxu0 %v458
    %518 = vmatprep.subr.mxu0 0.0
    %519 = vmatpush1.msra.mxu0 %v457
    %520 = vmatprep.subr.mxu0 0.0
    %521 = vmatpush1.msra.mxu0 %v456
    %522 = vmatprep.subr.mxu0 0.0
    %523 = vmatpush1.msra.mxu0 %v455
    %524 = vmatprep.subr.mxu0 0.0
    %525 = vmatpush1.msra.mxu0 %v454
    %526 = vmatprep.subr.mxu0 0.0
    %527 = vmatpush1.msra.mxu0 %v453
    %528 = vmatprep.subr.mxu0 0.0
    %529 = vmatpush1.msra.mxu0 %v452
    %530 = vmatprep.subr.mxu0 0.0
    %531 = vmatpush1.msra.mxu0 %v451
    %532 = vmatprep.subr.mxu0 0.0
    %533 = vmatpush1.msra.mxu0 %v450
    %534 = vmatprep.subr.mxu0 0.0
    %535 = vmatpush1.msra.mxu0 %v449
    %536 = vmatprep.subr.mxu0 0.0
    %537 = vmatpush1.msra.mxu0 %v448
    %538 = vmatprep.subr.mxu0 0.0
    %539 = vmatpush1.msra.mxu0 %v447
    %540 = vmatprep.subr.mxu0 0.0
    %541 = vmatpush1.msra.mxu0 %v446
    %542 = vmatprep.subr.mxu0 0.0
    %543 = vmatpush2.msra.mxu0 %v477
    %544 = vmatprep.subr.mxu0 0.0
    %545 = vmatpush2.msra.mxu0 %v476
    %546 = vmatprep.subr.mxu0 0.0
    %547 = vmatpush2.msra.mxu0 %v475
    %548 = vmatprep.subr.mxu0 0.0
    %549 = vmatpush2.msra.mxu0 %v474
    %550 = vmatprep.subr.mxu0 0.0
    %551 = vmatpush2.msra.mxu0 %v473
    %552 = vmatprep.subr.mxu0 0.0
    %553 = vmatpush2.msra.mxu0 %v472
    %554 = vmatprep.subr.mxu0 0.0
    %555 = vmatpush2.msra.mxu0 %v471
    %556 = vmatprep.subr.mxu0 0.0
    %557 = vmatpush2.msra.mxu0 %v470
    %558 = vmatprep.subr.mxu0 0.0
    %559 = vmatpush2.msra.mxu0 %v469
    %560 = vmatprep.subr.mxu0 0.0
    %561 = vmatpush2.msra.mxu0 %v468
    %562 = vmatprep.subr.mxu0 0.0
    %563 = vmatpush2.msra.mxu0 %v467
    %564 = vmatprep.subr.mxu0 0.0
    %565 = vmatpush2.msra.mxu0 %v466
    %566 = vmatprep.subr.mxu0 0.0
    %567 = vmatpush2.msra.mxu0 %v465
    %568 = vmatprep.subr.mxu0 0.0
    %569 = vmatpush2.msra.mxu0 %v464
    %570 = vmatprep.subr.mxu0 0.0
    %571 = vmatpush2.msra.mxu0 %v463
    %572 = vmatprep.subr.mxu0 0.0
    %573 = vmatpush2.msra.mxu0 %v462
    %574 = vmatprep.mubr.f32.mxu0 %v383
    %575 = vmatmul.mubr.f32.gmra.mxu0 %v382
    %v576 = vpop.f32.mrf.mxu0
    %v577 = vadd.f32 0.0, %v576
    %v578 = vpop.f32.mrf.mxu0
    %579 = vmatprep.mubr.f32.mxu0 %v387
    %580 = vmatmul.mubr.f32.gmra.mxu0 %v386
    %v581 = vpop.f32.mrf.mxu0
    %v582 = vadd.f32 0.0, %v581
    %v583 = vpop.f32.mrf.mxu0
    %584 = vmatprep.mubr.f32.mxu0 %v391
    %585 = vmatmul.mubr.f32.gmra.mxu0 %v390
    %v586 = vpop.f32.mrf.mxu0
    %v587 = vadd.f32 0.0, %v586
    %v588 = vpop.f32.mrf.mxu0
    %589 = vmatprep.mubr.f32.mxu0 %v395
    %590 = vmatmul.mubr.f32.gmra.mxu0 %v394
    %v591 = vpop.f32.mrf.mxu0
    %v592 = vadd.f32 0.0, %v591
    %v593 = vpop.f32.mrf.mxu0
    %594 = vmatprep.mubr.f32.mxu0 %v399
    %595 = vmatmul.mubr.f32.gmra.mxu0 %v398
    %v596 = vpop.f32.mrf.mxu0
    %v597 = vadd.f32 0.0, %v596
    %v598 = vpop.f32.mrf.mxu0
    %599 = vmatprep.mubr.f32.mxu0 %v403
    %600 = vmatmul.mubr.f32.gmra.mxu0 %v402
    %v601 = vpop.f32.mrf.mxu0
    %v602 = vadd.f32 0.0, %v601
    %v603 = vpop.f32.mrf.mxu0
    %604 = vmatprep.mubr.f32.mxu0 %v407
    %605 = vmatmul.mubr.f32.gmra.mxu0 %v406
    %v606 = vpop.f32.mrf.mxu0
    %v607 = vadd.f32 0.0, %v606
    %v608 = vpop.f32.mrf.mxu0
    %609 = vmatprep.mubr.f32.mxu0 %v411
    %610 = vmatmul.mubr.f32.gmra.mxu0 %v410
    %v611 = vpop.f32.mrf.mxu0
    %v612 = vadd.f32 0.0, %v611
    %v613 = vpop.f32.mrf.mxu0
    %614 = vdwg.mxu0
    %615 = vmatprep.subr.mxu0 0.0
    %616 = vmatpush1.msra.mxu0 %v493
    %617 = vmatprep.subr.mxu0 0.0
    %618 = vmatpush1.msra.mxu0 %v492
    %619 = vmatprep.subr.mxu0 0.0
    %620 = vmatpush1.msra.mxu0 %v491
    %621 = vmatprep.subr.mxu0 0.0
    %622 = vmatpush1.msra.mxu0 %v490
    %623 = vmatprep.subr.mxu0 0.0
    %624 = vmatpush1.msra.mxu0 %v489
    %625 = vmatprep.subr.mxu0 0.0
    %626 = vmatpush1.msra.mxu0 %v488
    %627 = vmatprep.subr.mxu0 0.0
    %628 = vmatpush1.msra.mxu0 %v487
    %629 = vmatprep.subr.mxu0 0.0
    %630 = vmatpush1.msra.mxu0 %v486
    %631 = vmatprep.subr.mxu0 0.0
    %632 = vmatpush1.msra.mxu0 %v485
    %633 = vmatprep.subr.mxu0 0.0
    %634 = vmatpush1.msra.mxu0 %v484
    %635 = vmatprep.subr.mxu0 0.0
    %636 = vmatpush1.msra.mxu0 %v483
    %637 = vmatprep.subr.mxu0 0.0
    %638 = vmatpush1.msra.mxu0 %v482
    %639 = vmatprep.subr.mxu0 0.0
    %640 = vmatpush1.msra.mxu0 %v481
    %641 = vmatprep.subr.mxu0 0.0
    %642 = vmatpush1.msra.mxu0 %v480
    %643 = vmatprep.subr.mxu0 0.0
    %644 = vmatpush1.msra.mxu0 %v479
    %645 = vmatprep.subr.mxu0 0.0
    %646 = vmatpush1.msra.mxu0 %v478
    %647 = vmatprep.subr.mxu0 0.0
    %648 = vmatpush2.msra.mxu0 %v509
    %649 = vmatprep.subr.mxu0 0.0
    %650 = vmatpush2.msra.mxu0 %v508
    %651 = vmatprep.subr.mxu0 0.0
    %652 = vmatpush2.msra.mxu0 %v507
    %653 = vmatprep.subr.mxu0 0.0
    %654 = vmatpush2.msra.mxu0 %v506
    %655 = vmatprep.subr.mxu0 0.0
    %656 = vmatpush2.msra.mxu0 %v505
    %657 = vmatprep.subr.mxu0 0.0
    %658 = vmatpush2.msra.mxu0 %v504
    %659 = vmatprep.subr.mxu0 0.0
    %660 = vmatpush2.msra.mxu0 %v503
    %661 = vmatprep.subr.mxu0 0.0
    %662 = vmatpush2.msra.mxu0 %v502
    %663 = vmatprep.subr.mxu0 0.0
    %664 = vmatpush2.msra.mxu0 %v501
    %665 = vmatprep.subr.mxu0 0.0
    %666 = vmatpush2.msra.mxu0 %v500
    %667 = vmatprep.subr.mxu0 0.0
    %668 = vmatpush2.msra.mxu0 %v499
    %669 = vmatprep.subr.mxu0 0.0
    %670 = vmatpush2.msra.mxu0 %v498
    %671 = vmatprep.subr.mxu0 0.0
    %672 = vmatpush2.msra.mxu0 %v497
    %673 = vmatprep.subr.mxu0 0.0
    %674 = vmatpush2.msra.mxu0 %v496
    %675 = vmatprep.subr.mxu0 0.0
    %676 = vmatpush2.msra.mxu0 %v495
    %677 = vmatprep.subr.mxu0 0.0
    %678 = vmatpush2.msra.mxu0 %v494
    %679 = vmatprep.mubr.f32.mxu0 %v385
    %680 = vmatmul.mubr.f32.gmra.mxu0 %v384
    %v681 = vpop.f32.mrf.mxu0
    %v682 = vadd.f32 %v577, %v681
    %v683 = vpop.f32.mrf.mxu0
    %684 = vmatprep.mubr.f32.mxu0 %v389
    %685 = vmatmul.mubr.f32.gmra.mxu0 %v388
    %v686 = vpop.f32.mrf.mxu0
    %v687 = vadd.f32 %v582, %v686
    %v688 = vpop.f32.mrf.mxu0
    %689 = vmatprep.mubr.f32.mxu0 %v393
    %690 = vmatmul.mubr.f32.gmra.mxu0 %v392
    %v691 = vpop.f32.mrf.mxu0
    %v692 = vadd.f32 %v587, %v691
    %v693 = vpop.f32.mrf.mxu0
    %694 = vmatprep.mubr.f32.mxu0 %v397
    %695 = vmatmul.mubr.f32.gmra.mxu0 %v396
    %v696 = vpop.f32.mrf.mxu0
    %v697 = vadd.f32 %v592, %v696
    %v698 = vpop.f32.mrf.mxu0
    %699 = vmatprep.mubr.f32.mxu0 %v401
    %700 = vmatmul.mubr.f32.gmra.mxu0 %v400
    %v701 = vpop.f32.mrf.mxu0
    %v702 = vadd.f32 %v597, %v701
    %v703 = vpop.f32.mrf.mxu0
    %704 = vmatprep.mubr.f32.mxu0 %v405
    %705 = vmatmul.mubr.f32.gmra.mxu0 %v404
    %v706 = vpop.f32.mrf.mxu0
    %v707 = vadd.f32 %v602, %v706
    %v708 = vpop.f32.mrf.mxu0
    %709 = vmatprep.mubr.f32.mxu0 %v409
    %710 = vmatmul.mubr.f32.gmra.mxu0 %v408
    %v711 = vpop.f32.mrf.mxu0
    %v712 = vadd.f32 %v607, %v711
    %v713 = vpop.f32.mrf.mxu0
    %714 = vmatprep.mubr.f32.mxu0 %v413
    %715 = vmatmul.mubr.f32.gmra.mxu0 %v412
    %v716 = vpop.f32.mrf.mxu0
    %v717 = vadd.f32 %v612, %v716
    %v718 = vpop.f32.mrf.mxu0
    %719 = vdwg.mxu0
    %720 = vst [vmem:[#allocation9] sm:$0xff] %v682
    %721 = vst [vmem:[#allocation9 + $0x8] sm:$0xff] %v687
    %722 = vst [vmem:[#allocation9 + $0x10] sm:$0xff] %v692
    %723 = vst [vmem:[#allocation9 + $0x18] sm:$0xff] %v697
    %724 = vst [vmem:[#allocation9 + $0x20] sm:$0xff] %v702
    %725 = vst [vmem:[#allocation9 + $0x28] sm:$0xff] %v707
    %726 = vst [vmem:[#allocation9 + $0x30] sm:$0xff] %v712
    %727 = vst [vmem:[#allocation9 + $0x38] sm:$0xff] %v717
    // Predicated region
    $region30: #{sparse_autoencoder_forward.1} parent=1 // pred_check
      _
    $region31: #{sparse_autoencoder_forward.1} parent=1 // pred_check_branch
      %729 = sbr.rel (0) target = $region33
    $region32: #{sparse_autoencoder_forward.1} parent=1 // pred_region
      %s731 = ssub.s32 4096, 4096
      %732 = vsyncadd [#allocation4], %s731
      %s733 = sshll.u32 [#allocation8], 4
      %s734 = int_to_ptr.vmem [resolvable:$true] %s733
      %739 = dma.vmem_to_hbm [thread:$0]  %s734, 4096, %s4, [#allocation4], 512, 512, 32
    $region33: #{sparse_autoencoder_forward.1} parent=1 // pred_fallthru
      _
    // Predicated region
    $region34: #{sparse_autoencoder_forward.1} parent=1 // pred_check
      _
    $region35: #{sparse_autoencoder_forward.1} parent=1 // pred_check_branch
      %741 = sbr.rel (0) target = $region37
    $region36: #{sparse_autoencoder_forward.1} parent=1 // pred_region
      %s743 = ssub.s32 1024, 1024
      %744 = vsyncadd [#allocation10], %s743
      %s745 = sshll.u32 [#allocation9], 4
      %s746 = int_to_ptr.vmem [resolvable:$true] %s745
      %751 = dma.vmem_to_hbm [thread:$0]  %s746, 1024, %s5, [#allocation10], 128, 128, 8
    $region37: #{sparse_autoencoder_forward.1} parent=1 // pred_fallthru
      _
    // Predicated region
    $region38: #{sparse_autoencoder_forward.1} parent=1 // pred_check
      _
    $region39: #{sparse_autoencoder_forward.1} parent=1 // pred_check_branch
      %753 = sbr.rel (0) target = $region41
    $region40: #{sparse_autoencoder_forward.1} parent=1 // pred_region
      %754 = dma.done [#allocation4], 4096
    $region41: #{sparse_autoencoder_forward.1} parent=1 // pred_fallthru
      _
    // Predicated region
    $region42: #{sparse_autoencoder_forward.1} parent=1 // pred_check
      _
    $region43: #{sparse_autoencoder_forward.1} parent=1 // pred_check_branch
      %756 = sbr.rel (0) target = $region45
    $region44: #{sparse_autoencoder_forward.1} parent=1 // pred_region
      %757 = dma.done [#allocation10], 1024
    $region45: #{sparse_autoencoder_forward.1} parent=1 // pred_fallthru
      _
    %758 = vsyncpa [#allocation3], 1
    %759 = vsyncpa [#allocation6], 1
    %760 = vsyncpa [#allocation4], 1
    %761 = vsyncpa [#allocation10], 1

</llo_original>
